<compile_context>
chip_gen: v6e
topology: v6e:2x2x1
jax: 0.10.0
libtpu: 0.0.40
codegen_flags: <defaults>
</compile_context>

<pallas_src>
import jax
import jax.numpy as jnp
from jax.experimental import pallas as pl
from jax.experimental.pallas import tpu as pltpu


def _value_head_kernel(x_ref, w_ref, b_ref, o_ref):
    # x_ref: (tm, H)   activation row tile (VMEM)
    # w_ref: (H, 128)  zero-padded weight slab, column 0 = w (VMEM)
    # b_ref: (1, 1)    f32 bias scalar (SMEM)
    # o_ref: (tm, 1)   per-row scalar output (VMEM)
    x = x_ref[...]
    w = w_ref[...]
    if x.dtype != w.dtype:
        # Match PyTorch: activations are cast to the weight dtype before the linear.
        x = x.astype(w.dtype)
    # MXU matmul with f32 accumulation; no whole-tile elementwise intermediates.
    acc = jnp.dot(x, w, preferred_element_type=jnp.float32)      # (tm, 128)
    o_ref[...] = (acc[:, 0:1] + b_ref[0, 0]).astype(o_ref.dtype)  # column 0 + bias


def _round_up(x, m):
    return ((x + m - 1) // m) * m


def _vmem_capacity_bytes():
    """Per-core VMEM capacity; fall back to the conservative 64 MiB (v7x per-TC)."""
    try:
        return int(pltpu.get_tpu_info().vmem_capacity_bytes)
    except Exception:
        return 64 << 20


def _dimension_semantics():
    """CORE_PARALLEL shards the M grid axis across both TensorCores on v7x;
    plain "parallel" elsewhere (v5e/v6e have 1 TC per chip)."""
    try:
        kind = jax.devices()[0].device_kind.lower()
        if ("v7" in kind or "7x" in kind) and hasattr(pltpu, "CORE_PARALLEL"):
            return (pltpu.CORE_PARALLEL,)
    except Exception:
        pass
    return ("parallel",)


def _choose_tm(M, H, x_itemsize, w_itemsize, tm, vmem_cap):
    """Pick the row tile: as big as this generation's VMEM allows (amortizes the
    ~0.35us/grid-step overhead), sized from the true double-buffered need."""
    vmem_target = (vmem_cap * 3) // 4              # leave Mosaic scratch headroom
    weight_bytes = 2 * H * 128 * w_itemsize        # double-buffered weight slab
    slack = 6 << 20                                # MXU result + output + misc
    input_budget = max(vmem_target - weight_bytes - slack, 1 << 20)
    row_bytes = max(H * x_itemsize, 1)
    tm_cap = max(input_budget // (2 * row_bytes), 8)   # 2-deep input pipeline
    if tm is None:
        tm = 4096 if vmem_cap >= (96 << 20) else 2048  # 128 MiB parts vs 64 MiB v7x
    tm = int(min(tm, tm_cap))
    if tm >= M:
        return max(M, 1)                           # single full-extent tile
    # Sublane-aligned row count: multiples of 128 when affordable, else of 8.
    align = 128 if tm >= 128 else 8
    tm = max((tm // align) * align, 8)
    if tm >= M:
        return M
    # Balance rows across the tiles we already need (shrinks last-block waste).
    n_tiles = pl.cdiv(M, tm)
    tm = min(tm, _round_up(pl.cdiv(M, n_tiles), align))
    return tm


def value_head_forward(hidden_states, weight, bias, *, tm=None):
    """hidden_states: (B, S, H); weight: (1, H) [nn.Linear layout]; bias: (1,)."""
    B, S, H = hidden_states.shape
    M = B * S
    x_itemsize = jnp.dtype(hidden_states.dtype).itemsize
    w_itemsize = jnp.dtype(weight.dtype).itemsize
    out_dtype = weight.dtype

    vmem_cap = _vmem_capacity_bytes()
    tm = _choose_tm(M, H, x_itemsize, w_itemsize, tm, vmem_cap)
    n_tiles = pl.cdiv(M, tm)

    # Row-major flatten is free (no HBM copy); M is NOT padded — Pallas masks
    # the partial last block on both read and write.
    x2d = hidden_states.reshape(M, H)

    # One-time O(H*128) weight prep: lane-padded slab, column 0 = w, native dtype.
    w_pad = jnp.pad(weight.reshape(H, 1), ((0, 0), (0, 127)))
    b_smem = jnp.asarray(bias, dtype=jnp.float32).reshape(1, 1)

    # True VMEM requirement: double-buffered input tile + double-buffered weight
    # slab + (tm,128) f32 MXU result + output + slack.  Never clamp below it.
    req = (2 * tm * H * x_itemsize
           + 2 * H * 128 * w_itemsize
           + tm * 128 * 4
           + 2 * tm * jnp.dtype(out_dtype).itemsize
           + (4 << 20))
    vmem_limit = int(min(max(req, 16 << 20), vmem_cap))

    def call(dim_sems):
        return pl.pallas_call(
            _value_head_kernel,
            out_shape=jax.ShapeDtypeStruct((M, 1), out_dtype),
            grid_spec=pltpu.PrefetchScalarGridSpec(
                num_scalar_prefetch=0,
                grid=(n_tiles,),
                in_specs=[
                    pl.BlockSpec((tm, H), lambda i: (i, 0)),        # streamed rows
                    pl.BlockSpec((H, 128), lambda i: (0, 0)),       # resident weight slab
                    pl.BlockSpec(memory_space=pltpu.MemorySpace.SMEM),  # bias scalar
                ],
                out_specs=pl.BlockSpec((tm, 1), lambda i: (i, 0)),
            ),
            compiler_params=pltpu.CompilerParams(
                dimension_semantics=dim_sems,
                vmem_limit_bytes=vmem_limit,
            ),
        )(x2d, w_pad, b_smem)

    dim_sems = _dimension_semantics()
    try:
        out2d = call(dim_sems)
    except Exception:
        if dim_sems == ("parallel",):
            raise
        out2d = call(("parallel",))     # safe fallback if CORE_PARALLEL is rejected

    return out2d.reshape(B, S, 1)


def _reference(hidden_states, weight, bias):
    x = hidden_states.astype(weight.dtype)
    return (jnp.matmul(x, weight.reshape(-1, 1))
            + bias.astype(weight.dtype)).astype(weight.dtype)


if __name__ == "__main__":
    key = jax.random.PRNGKey(0)

    # --- Small canonical test (single full-extent tile) ---
    B, S, H = 2, 8, 32
    k_x, k_w, k_b, k_rest = jax.random.split(key, 4)
    hidden_states = jax.random.normal(k_x, (B, S, H), dtype=jnp.float32)
    weight = jax.random.normal(k_w, (1, H), dtype=jnp.float32) * 0.02
    bias = jax.random.normal(k_b, (1,), dtype=jnp.float32) * 0.02

    out = jax.block_until_ready(value_head_forward(hidden_states, weight, bias))
    ref = _reference(hidden_states, weight, bias)
    assert out.shape == (B, S, 1), out.shape
    assert jnp.allclose(out, ref, atol=1e-5, rtol=1e-5), float(jnp.max(jnp.abs(out - ref)))

    # --- Multi-tile path with a partial (masked) last block ---
    B2, S2, H2 = 2, 200, 128
    k_x2, k_w2, k_b2, k_rest2 = jax.random.split(k_rest, 4)
    hs2 = jax.random.normal(k_x2, (B2, S2, H2), dtype=jnp.float32)
    w2 = jax.random.normal(k_w2, (1, H2), dtype=jnp.float32) * 0.02
    b2 = jax.random.normal(k_b2, (1,), dtype=jnp.float32) * 0.02

    out2 = jax.block_until_ready(value_head_forward(hs2, w2, b2, tm=128))
    ref2 = _reference(hs2, w2, b2)
    assert out2.shape == (B2, S2, 1), out2.shape
    assert jnp.allclose(out2, ref2, atol=1e-5, rtol=1e-5), float(jnp.max(jnp.abs(out2 - ref2)))

    # --- Mixed dtype path: f32 activations, bf16 weight (PyTorch casts x->bf16) ---
    k_x3, k_w3, k_b3 = jax.random.split(k_rest2, 3)
    hs3 = jax.random.normal(k_x3, (2, 16, 64), dtype=jnp.float32)
    w3 = (jax.random.normal(k_w3, (1, 64), dtype=jnp.float32) * 0.02).astype(jnp.bfloat16)
    b3 = (jax.random.normal(k_b3, (1,), dtype=jnp.float32) * 0.02).astype(jnp.bfloat16)

    out3 = jax.block_until_ready(value_head_forward(hs3, w3, b3))
    ref3 = _reference(hs3, w3, b3)
    assert out3.shape == (2, 16, 1), out3.shape
    err3 = float(jnp.max(jnp.abs(out3.astype(jnp.float32) - ref3.astype(jnp.float32))))
    assert jnp.allclose(out3.astype(jnp.float32), ref3.astype(jnp.float32),
                        atol=2e-2, rtol=2e-2), err3

    print("KERNEL_OK")
</pallas_src>

<mosaic_0001>
module attributes {stable_mosaic.version = 11 : i64} {
  func.func @_value_head_kernel(%arg0: i32, %arg1: memref<16x32xf32, #tpu.memory_space<vmem>>, %arg2: memref<32x128xf32, #tpu.memory_space<vmem>>, %arg3: memref<1x1xf32, #tpu.memory_space<smem>>, %arg4: memref<16x1xf32, #tpu.memory_space<vmem>>) attributes {dimension_semantics = [#tpu.dimension_semantics<parallel>], iteration_bounds = array<i64: 1>, scalar_prefetch = 0 : i64, scratch_operands = 0 : i64, tpu.core_type = #tpu.core_type<tc>, window_params = [{transform_indices = @transform_0, window_bounds = array<i64: 16, 32>}, {pipeline_mode = #tpu.pipeline_mode<synchronous>, transform_indices = @transform_1, window_bounds = array<i64: 32, 128>}, {transform_indices = @transform_2, window_bounds = array<i64: 1, 1>}, {transform_indices = @transform_3, window_bounds = array<i64: 16, 1>}]} {
    %c0 = arith.constant 0 : index
    %c0_0 = arith.constant 0 : index
    %0 = vector.load %arg1[%c0, %c0_0] : memref<16x32xf32, #tpu.memory_space<vmem>>, vector<16x32xf32>
    %c0_1 = arith.constant 0 : index
    %c0_2 = arith.constant 0 : index
    %1 = vector.load %arg2[%c0_1, %c0_2] : memref<32x128xf32, #tpu.memory_space<vmem>>, vector<32x128xf32>
    %cst = arith.constant dense<0.000000e+00> : vector<16x128xf32>
    %2 = tpu.matmul %0, %1, %cst {dimension_numbers = #tpu.dot_dimension_numbers<[1], [0], [0], [1], [0, 0, 1, 1], [], []>} : vector<16x32xf32>, vector<32x128xf32>, vector<16x128xf32> -> vector<16x128xf32>
    %3 = vector.extract_strided_slice %2 {offsets = [0, 0], sizes = [16, 1], strides = [1, 1]} : vector<16x128xf32> to vector<16x1xf32>
    %c0_3 = arith.constant 0 : index
    %c0_4 = arith.constant 0 : index
    %4 = memref.load %arg3[%c0_3, %c0_4] : memref<1x1xf32, #tpu.memory_space<smem>>
    %5 = vector.broadcast %4 : f32 to vector<16x1xf32>
    %6 = arith.addf %3, %5 : vector<16x1xf32>
    %c0_5 = arith.constant 0 : index
    %c0_6 = arith.constant 0 : index
    %7 = vector.load %arg4[%c0_5, %c0_6] : memref<16x1xf32, #tpu.memory_space<vmem>>, vector<16x1xf32>
    tpu.vector_store %arg4[%c0_5, %c0_6], %6 {strides = array<i32>} : memref<16x1xf32, #tpu.memory_space<vmem>>, vector<16x1xf32>,
    return
  }
  func.func @transform_0(%arg0: i32) -> (i32, i32) {
    %c0_i32 = arith.constant 0 : i32
    %c0_i32_0 = arith.constant 0 : i32
    return %arg0, %c0_i32 : i32, i32
  }
  func.func @transform_1(%arg0: i32) -> (i32, i32) {
    %c0_i32 = arith.constant 0 : i32
    %c0_i32_0 = arith.constant 0 : i32
    %c0_i32_1 = arith.constant 0 : i32
    return %c0_i32, %c0_i32_0 : i32, i32
  }
  func.func @transform_2(%arg0: i32) -> (i32, i32) {
    %c0_i32 = arith.constant 0 : i32
    %c0_i32_0 = arith.constant 0 : i32
    %c0_i32_1 = arith.constant 0 : i32
    return %c0_i32, %c0_i32_0 : i32, i32
  }
  func.func @transform_3(%arg0: i32) -> (i32, i32) {
    %c0_i32 = arith.constant 0 : i32
    %c0_i32_0 = arith.constant 0 : i32
    return %arg0, %c0_i32 : i32, i32
  }
}

</mosaic_0001>

<llo_original>
// kernel: tpu_custom_call.1
$region0: #{tpu_custom_call.1}
  #allocation0 [shape = 'u32[]', space=smem, size = 0x4, offset = 0x4, fixed_abs, tag = 'smem constant byte address 0x4 - core index']
  #allocation1 [shape = 'u32[144,128]{1,0:T(1,128)}', space=vmem, size = 0x12000, scoped, tag = 'internal scratch']
  #allocation2 [shape = 'f32[1,1]{1,0:T(1,128)S(6)}', space=smem, size = 0x200, scoped, tag = 'scoped memory for tpu_custom_call.1']
  %s0 = inlined_call_operand.hbm [shape: f32[16,32], index: 0, kind: input, shape index: {}]
  %s1 = inlined_call_operand.hbm [shape: f32[32,128], index: 1, kind: input, shape index: {}]
  %s2 = inlined_call_operand.<no memory space> [shape: f32[1,1], index: 2, kind: input, shape index: {}]
  %s3 = inlined_call_operand.vmem [shape: f32[16,1], index: 3, kind: output, shape index: {}]
  %s4 = sld [smem:[#allocation0]]
  $region30: #{tpu_custom_call.1} parent=0
    _
  %s6 = ssub.s32 1, %s4
  %s7 = scalar_select 0, %s6, %s4
  %8 = sst [smem:[#allocation2]] %s2
  $region1: #{tpu_custom_call.1} parent=0
    #allocation3 [shape = 'u8[8192]{0}', space=vmem, size = 0x2000, scoped, tag = 'input window, operand 0, single buffered']
    #allocation4 [shape = 's32[1]{0}', space=sflag, size = 0x4, scoped, tag = 'scoped memory for tpu_custom_call.1']
    #allocation5 [shape = 'u8[16384]{0}', space=vmem, size = 0x4000, scoped, tag = 'input window, operand 1, single buffered']
    #allocation6 [shape = 's32[1]{0}', space=sflag, size = 0x4, scoped, tag = 'scoped memory for tpu_custom_call.1']
    %9 = vsyncpa [#allocation4], 0
    %10 = vsyncpa [#allocation6], 0
    // Predicated region
    $region2: #{tpu_custom_call.1} parent=1 // pred_check
      _
    $region3: #{tpu_custom_call.1} parent=1 // pred_check_branch
      %12 = sbr.rel (0) target = $region5
    $region4: #{tpu_custom_call.1} parent=1 // pred_region
      %s14 = ssub.s32 256, 256
      %15 = vsyncadd [#allocation4], %s14
      %s16 = sshll.u32 [#allocation3], 4
      %s17 = int_to_ptr.vmem [resolvable:$true] %s16
      %22 = dma.hbm_to_vmem [thread:$0]  %s0, 256, %s17, [#allocation4], 128, 128, 8
    $region5: #{tpu_custom_call.1} parent=1 // pred_fallthru
      _
    // Predicated region
    $region6: #{tpu_custom_call.1} parent=1 // pred_check
      _
    $region7: #{tpu_custom_call.1} parent=1 // pred_check_branch
      %24 = sbr.rel (0) target = $region9
    $region8: #{tpu_custom_call.1} parent=1 // pred_region
      %s26 = ssub.s32 512, 512
      %27 = vsyncadd [#allocation6], %s26
      %s28 = sshll.u32 [#allocation5], 4
      %s29 = int_to_ptr.vmem [resolvable:$true] %s28
      %34 = dma.hbm_to_vmem [thread:$0]  %s1, 512, %s29, [#allocation6], 128, 128, 8
    $region9: #{tpu_custom_call.1} parent=1 // pred_fallthru
      _
    // Predicated region
    $region10: #{tpu_custom_call.1} parent=1 // pred_check
      _
    $region11: #{tpu_custom_call.1} parent=1 // pred_check_branch
      %36 = sbr.rel (0) target = $region13
    $region12: #{tpu_custom_call.1} parent=1 // pred_region
      _
    $region13: #{tpu_custom_call.1} parent=1 // pred_fallthru
      _
    // Predicated region
    $region14: #{tpu_custom_call.1} parent=1 // pred_check
      _
    $region15: #{tpu_custom_call.1} parent=1 // pred_check_branch
      %38 = sbr.rel (0) target = $region17
    $region16: #{tpu_custom_call.1} parent=1 // pred_region
      %39 = dma.done [#allocation4], 256
    $region17: #{tpu_custom_call.1} parent=1 // pred_fallthru
      _
    // Predicated region
    $region18: #{tpu_custom_call.1} parent=1 // pred_check
      _
    $region19: #{tpu_custom_call.1} parent=1 // pred_check_branch
      %41 = sbr.rel (0) target = $region21
    $region20: #{tpu_custom_call.1} parent=1 // pred_region
      %42 = dma.done [#allocation6], 512
    $region21: #{tpu_custom_call.1} parent=1 // pred_fallthru
      _
    %v43 = vld [vmem:[#allocation3] sm:$0xff]
    %v44 = vld [vmem:[#allocation3 + $0x8] sm:$0xff]
    %v45 = vld [vmem:[#allocation5] sm:$0xff]
    %v46 = vld [vmem:[#allocation5 + $0x8] sm:$0xff]
    %v47 = vld [vmem:[#allocation5 + $0x10] sm:$0xff]
    %v48 = vld [vmem:[#allocation5 + $0x18] sm:$0xff]
    %vm49 = vcmask 261120
    %v51 = vsel %vm49, %v43, 0
    %v54 = vsel %vm49, %v44, 0
    %56 = vmatprep.subr.mxu0 0.0
    %57 = vmatpush1.msra.mxu0 0.0
    %58 = vmatprep.subr.mxu0 0.0
    %59 = vmatpush1.msra.mxu0 0.0
    %60 = vmatprep.subr.mxu0 0.0
    %61 = vmatpush1.msra.mxu0 0.0
    %62 = vmatprep.subr.mxu0 0.0
    %63 = vmatpush1.msra.mxu0 0.0
    %64 = vmatprep.subr.mxu0 0.0
    %65 = vmatpush1.msra.mxu0 0.0
    %66 = vmatprep.subr.mxu0 0.0
    %67 = vmatpush1.msra.mxu0 0.0
    %68 = vmatprep.subr.mxu0 0.0
    %69 = vmatpush1.msra.mxu0 0.0
    %70 = vmatprep.subr.mxu0 0.0
    %71 = vmatpush1.msra.mxu0 0.0
    %72 = vmatprep.subr.mxu0 0.0
    %73 = vmatpush1.msra.mxu0 0.0
    %74 = vmatprep.subr.mxu0 0.0
    %75 = vmatpush1.msra.mxu0 0.0
    %76 = vmatprep.subr.mxu0 0.0
    %77 = vmatpush1.msra.mxu0 0.0
    %78 = vmatprep.subr.mxu0 0.0
    %79 = vmatpush1.msra.mxu0 0.0
    %80 = vmatprep.subr.mxu0 0.0
    %81 = vmatpush1.msra.mxu0 %v48
    %82 = vmatprep.subr.mxu0 0.0
    %83 = vmatpush1.msra.mxu0 %v47
    %84 = vmatprep.subr.mxu0 0.0
    %85 = vmatpush1.msra.mxu0 %v46
    %86 = vmatprep.subr.mxu0 0.0
    %87 = vmatpush1.msra.mxu0 %v45
    %88 = vmatprep.subr.mxu0 0.0
    %89 = vmatpush2.msra.mxu0 0.0
    %90 = vmatprep.subr.mxu0 0.0
    %91 = vmatpush2.msra.mxu0 0.0
    %92 = vmatprep.subr.mxu0 0.0
    %93 = vmatpush2.msra.mxu0 0.0
    %94 = vmatprep.subr.mxu0 0.0
    %95 = vmatpush2.msra.mxu0 0.0
    %96 = vmatprep.subr.mxu0 0.0
    %97 = vmatpush2.msra.mxu0 0.0
    %98 = vmatprep.subr.mxu0 0.0
    %99 = vmatpush2.msra.mxu0 0.0
    %100 = vmatprep.subr.mxu0 0.0
    %101 = vmatpush2.msra.mxu0 0.0
    %102 = vmatprep.subr.mxu0 0.0
    %103 = vmatpush2.msra.mxu0 0.0
    %104 = vmatprep.subr.mxu0 0.0
    %105 = vmatpush2.msra.mxu0 0.0
    %106 = vmatprep.subr.mxu0 0.0
    %107 = vmatpush2.msra.mxu0 0.0
    %108 = vmatprep.subr.mxu0 0.0
    %109 = vmatpush2.msra.mxu0 0.0
    %110 = vmatprep.subr.mxu0 0.0
    %111 = vmatpush2.msra.mxu0 0.0
    %112 = vmatprep.subr.mxu0 0.0
    %113 = vmatpush2.msra.mxu0 0.0
    %114 = vmatprep.subr.mxu0 0.0
    %115 = vmatpush2.msra.mxu0 0.0
    %116 = vmatprep.subr.mxu0 0.0
    %117 = vmatpush2.msra.mxu0 0.0
    %118 = vmatprep.subr.mxu0 0.0
    %119 = vmatpush2.msra.mxu0 0.0
    %120 = vmatprep.mubr.f32.mxu0 0.0
    %121 = vmatmul.mubr.f32.gmra.mxu0 %v51
    %v122 = vpop.f32.mrf.mxu0
    %v123 = vadd.f32 0.0, %v122
    %v124 = vpop.f32.mrf.mxu0
    %125 = vmatprep.mubr.f32.mxu0 0.0
    %126 = vmatmul.mubr.f32.gmra.mxu0 %v54
    %v127 = vpop.f32.mrf.mxu0
    %v128 = vadd.f32 0.0, %v127
    %v129 = vpop.f32.mrf.mxu0
    %130 = vdwg.mxu0
    %s131 = sld [smem:[#allocation2]]
    %v132 = vstv %s131
    %v133 = vadd.f32 %v123, %v132
    %v134 = vadd.f32 %v128, %v132
    %vm135 = vcmask 7168
    %136 = vst.msk [vmem:[%s3] sm:$0xff] %vm135, %v133
    %137 = vst.msk [vmem:[%s3 + $0x8] sm:$0xff] %vm135, %v134
    // Predicated region
    $region22: #{tpu_custom_call.1} parent=1 // pred_check
      _
    $region23: #{tpu_custom_call.1} parent=1 // pred_check_branch
      %139 = sbr.rel (0) target = $region25
    $region24: #{tpu_custom_call.1} parent=1 // pred_region
      _
    $region25: #{tpu_custom_call.1} parent=1 // pred_fallthru
      _
    // Predicated region
    $region26: #{tpu_custom_call.1} parent=1 // pred_check
      _
    $region27: #{tpu_custom_call.1} parent=1 // pred_check_branch
      %141 = sbr.rel (0) target = $region29
    $region28: #{tpu_custom_call.1} parent=1 // pred_region
      _
    $region29: #{tpu_custom_call.1} parent=1 // pred_fallthru
      _
    %142 = vsyncpa [#allocation4], 1
    %143 = vsyncpa [#allocation6], 1

</llo_original>
